<compile_context>
chip_gen: v7x
topology: tpu7x:2x2x1
jax: 0.10.0
libtpu: 0.0.40
codegen_flags: <defaults>
</compile_context>

<pallas_src>
import math
from typing import Optional

import jax
import jax.numpy as jnp
from jax import lax
from jax.experimental import pallas as pl
from jax.experimental.pallas import tpu as pltpu


def _make_clip_loss_kernel(batch_size: int, tb: int, txt_resident: bool):
    inv_b = 0.5 / float(batch_size)  # loss = inv_b*(sum_lse_row + sum_lse_col - 2*sum_diag)

    def kernel(temp_ref, img_ref, txt_ref, loss_ref,
               img_scaled, m_row, l_row, m_col, l_col,
               acc_row, acc_col, acc_diag):
        # temp_ref:  SMEM (1,) f32 -- exp(clamp(logit_scale)) computed once in wrapper
        # img_ref:   VMEM (tb, D)  -- image rows of the current ROW tile
        # txt_ref:   VMEM (B, D) if resident else (tb, D) streamed column tile
        # loss_ref:  VMEM (1, 1) f32 output (written once, at the last grid step)
        i = pl.program_id(0)
        j = pl.program_id(1)
        ni = pl.num_programs(0)
        nj = pl.num_programs(1)

        # ---- init global scalar accumulators at the very first grid step ----
        @pl.when(jnp.logical_and(i == 0, j == 0))
        def _():
            acc_row[...] = jnp.zeros_like(acc_row)
            acc_col[...] = jnp.zeros_like(acc_col)
            acc_diag[...] = jnp.zeros_like(acc_diag)

        # ---- start of a row sweep: scale the resident image tile ONCE by the
        #      temperature (tb*D multiplies instead of nb*tb*tb) and reset the
        #      row-direction accumulators. ----
        @pl.when(j == 0)
        def _():
            img_scaled[...] = (img_ref[...].astype(jnp.float32)
                               * temp_ref[0]).astype(img_scaled.dtype)
            m_row[...] = jnp.full_like(m_row, -jnp.inf)
            l_row[...] = jnp.zeros_like(l_row)

        # ---- init column-direction accumulators for this column tile ----
        @pl.when(i == 0)
        def _():
            m_col[j] = jnp.full(m_col.shape[1:], -jnp.inf, dtype=jnp.float32)
            l_col[j] = jnp.zeros(l_col.shape[1:], dtype=jnp.float32)

        # ---- current text column tile ----
        if txt_resident:
            col_start = pl.multiple_of(j * tb, tb)
            txt_tile = txt_ref[pl.ds(col_start, tb), :]
        else:
            txt_tile = txt_ref[...]

        # ---- one MXU matmul per tile; temperature already folded into LHS ----
        logits = lax.dot_general(
            img_scaled[...], txt_tile,
            dimension_numbers=(((1,), (1,)), ((), ())),
            preferred_element_type=jnp.float32,
        )                                                            # (tb, tb) f32

        # ---- row-direction (logits_per_image) online logsumexp ----
        m_prev = m_row[...]
        m_new = jnp.maximum(m_prev, jnp.max(logits, axis=1, keepdims=True))
        l_row[...] = (l_row[...] * jnp.exp(m_prev - m_new)
                      + jnp.sum(jnp.exp(logits - m_new), axis=1, keepdims=True))
        m_row[...] = m_new

        # ---- column-direction (logits_per_text) online logsumexp ----
        mc_prev = m_col[j]                                            # (1, tb)
        mc_new = jnp.maximum(mc_prev, jnp.max(logits, axis=0, keepdims=True))
        l_col[j] = (l_col[j] * jnp.exp(mc_prev - mc_new)
                    + jnp.sum(jnp.exp(logits - mc_new), axis=0, keepdims=True))
        m_col[j] = mc_new

        # ---- diagonal (matching pair) term, taken from the SAME logits tile
        #      that feeds the LSE (numerically consistent, no extra (tb,D) work) ----
        @pl.when(i == j)
        def _():
            rows = lax.broadcasted_iota(jnp.int32, logits.shape, 0)
            cols = lax.broadcasted_iota(jnp.int32, logits.shape, 1)
            diag = jnp.where(rows == cols, logits, 0.0)
            acc_diag[...] += jnp.sum(
                jnp.sum(diag, axis=1, keepdims=True), axis=0, keepdims=True)

        # ---- finalize this row tile at the end of its column sweep ----
        @pl.when(j == nj - 1)
        def _():
            lse_row = m_row[...] + jnp.log(l_row[...])                # (tb, 1)
            acc_row[...] += jnp.sum(lse_row, axis=0, keepdims=True)

        # ---- finalize this column tile at the last row tile ----
        @pl.when(i == ni - 1)
        def _():
            lse_col = m_col[j] + jnp.log(l_col[j])                    # (1, tb)
            acc_col[...] += jnp.sum(lse_col, axis=1, keepdims=True)

        # ---- emit the scalar loss at the very last grid step ----
        @pl.when(jnp.logical_and(i == ni - 1, j == nj - 1))
        def _():
            total = acc_row[...] + acc_col[...] - 2.0 * acc_diag[...]
            loss_ref[...] = (inv_b * total).astype(loss_ref.dtype)

    return kernel


def _pick_tile(batch: int, block_b: int) -> int:
    """Largest 128-multiple tile <= block_b that divides the batch."""
    if batch <= block_b:
        return batch
    tb = block_b
    while tb >= 128:
        if batch % tb == 0 and tb % 128 == 0:
            return tb
        tb //= 2
    # TODO(synk): ragged batches need -inf padding masks instead of an error.
    raise ValueError(
        f"batch {batch} is not divisible by any 128-multiple tile <= {block_b}")


def contrastive_loss_with_temperature_pallas(
        image_embeddings, text_embeddings, logit_scale, *,
        block_b: int = 512,
        mxu_dtype=jnp.bfloat16,
        txt_resident: Optional[bool] = None,
        txt_buffering: Optional[int] = None):
    """Forward of ContrastiveLossWithTemperature (single-device path).

    image_embeddings: (B, D) f32 or bf16
    text_embeddings:  (B, D) f32 or bf16
    logit_scale:      scalar f32 (log of the learned temperature)
    mxu_dtype:        dtype fed to the MXU (default bf16; pass jnp.float32 or
                      None to keep the input dtype for exact f32 semantics).
    txt_resident:     force/disable keeping the whole text matrix in VMEM
                      (default: auto, based on chip VMEM capacity).
    txt_buffering:    optional deeper pipelining for the streamed text operand
                      (e.g. 3 on v5e when DMA is still exposed).
    Returns scalar loss (f32).
    """
    B, D = image_embeddings.shape
    assert text_embeddings.shape == (B, D)

    if mxu_dtype is None:
        mxu_dtype = image_embeddings.dtype
    mxu_bytes = jnp.dtype(mxu_dtype).itemsize

    img = image_embeddings.astype(mxu_dtype)
    txt = text_embeddings.astype(mxu_dtype)

    tb = _pick_tile(B, block_b)
    nb = B // tb

    # Per-TensorCore VMEM capacity; fall back to the smallest generation (v7x).
    try:
        vmem_cap = int(pltpu.get_tpu_info().vmem_capacity_bytes)
    except Exception:  # pragma: no cover - conservative fallback
        vmem_cap = 64 * 1024 * 1024

    # Keep the whole text matrix VMEM-resident when it fits comfortably: cuts
    # txt HBM traffic from nb*B*D to B*D and makes the inner sweep MXU-bound.
    txt_budget = min(vmem_cap // 4, 32 * 1024 * 1024)
    if txt_resident is None:
        txt_resident = (2 * B * D * mxu_bytes) <= txt_budget

    # forward() clamps logit_scale.data to [0, 4.6052] before exp(); the exp
    # is computed once here (scalar) rather than once per grid step.
    temperature = jnp.exp(jnp.clip(
        jnp.asarray(logit_scale, dtype=jnp.float32), 0.0, 4.6052)).reshape((1,))

    if txt_resident:
        txt_spec = pl.BlockSpec((B, D), lambda i, j: (0, 0))
        txt_vmem = 2 * B * D * mxu_bytes
    else:
        if txt_buffering is not None:
            txt_spec = pl.BlockSpec((tb, D), lambda i, j: (j, 0),
                                    pipeline_mode=pl.Buffered(txt_buffering))
        else:
            txt_spec = pl.BlockSpec((tb, D), lambda i, j: (j, 0))
        txt_vmem = max(2, txt_buffering or 2) * tb * D * mxu_bytes

    # VMEM limit derived from the actual buffers (+ headroom), capped at 75%
    # of physical per-core VMEM so double-buffering is never starved (v7x).
    scratch_vmem = (tb * D * mxu_bytes                  # img_scaled
                    + 2 * tb * 128 * 4                  # m_row / l_row (lane-padded)
                    + 2 * nb * 8 * tb * 4               # m_col / l_col (sublane-padded)
                    + 3 * 8 * 128 * 4)                  # scalar accumulators
    est = (2 * tb * D * mxu_bytes                       # image tile (double buffered)
           + txt_vmem
           + scratch_vmem
           + 6 * tb * tb * 4)                           # logits / exp temporaries
    vmem_limit = int(est * 1.5) + (4 << 20)
    vmem_limit = max(16 << 20, min(vmem_limit, int(vmem_cap * 0.75)))

    grid_spec = pltpu.PrefetchScalarGridSpec(
        num_scalar_prefetch=0,
        grid=(nb, nb),
        in_specs=[
            pl.BlockSpec(memory_space=pltpu.MemorySpace.SMEM),   # temperature
            pl.BlockSpec((tb, D), lambda i, j: (i, 0)),          # image row tile
            txt_spec,                                            # text (resident/streamed)
        ],
        out_specs=pl.BlockSpec((1, 1), lambda i, j: (0, 0)),
        scratch_shapes=[
            pltpu.VMEM((tb, D), mxu_dtype),        # temperature-scaled image tile
            pltpu.VMEM((tb, 1), jnp.float32),      # m_row
            pltpu.VMEM((tb, 1), jnp.float32),      # l_row
            pltpu.VMEM((nb, 1, tb), jnp.float32),  # m_col (per column tile)
            pltpu.VMEM((nb, 1, tb), jnp.float32),  # l_col (per column tile)
            pltpu.VMEM((1, 1), jnp.float32),       # acc: sum lse_row
            pltpu.VMEM((1, 1), jnp.float32),       # acc: sum lse_col
            pltpu.VMEM((1, 1), jnp.float32),       # acc: sum diag
        ],
    )

    loss = pl.pallas_call(
        _make_clip_loss_kernel(B, tb, txt_resident),
        out_shape=jax.ShapeDtypeStruct((1, 1), jnp.float32),
        grid_spec=grid_spec,
        compiler_params=pltpu.CompilerParams(
            # Column stats + scalar accumulators span the row axis -> both
            # grid axes must stay sequential.
            dimension_semantics=("arbitrary", "arbitrary"),
            vmem_limit_bytes=vmem_limit,
        ),
    )(temperature, img, txt)
    return loss[0, 0]


def _reference_loss(image_embeddings, text_embeddings, logit_scale):
    # Pure-JAX reference mirroring the PyTorch single-device forward.
    temperature = jnp.exp(jnp.clip(
        jnp.asarray(logit_scale, jnp.float32), 0.0, 4.6052))
    img = image_embeddings.astype(jnp.float32)
    txt = text_embeddings.astype(jnp.float32)
    logits_per_image = img @ txt.T * temperature
    logits_per_text = txt @ img.T * temperature
    labels = jnp.arange(img.shape[0])

    def ce(logits, labels):
        logp = jax.nn.log_softmax(logits, axis=-1)
        return -jnp.mean(jnp.take_along_axis(logp, labels[:, None], axis=-1))

    return 0.5 * (ce(logits_per_image, labels) + ce(logits_per_text, labels))


if __name__ == "__main__":
    # logit_scale initialized to log(1 / 0.07), as in the module __init__.
    logit_scale = jnp.asarray(math.log(1.0 / 0.07), dtype=jnp.float32)

    key = jax.random.PRNGKey(0)
    k1, k2, k3, k4 = jax.random.split(key, 4)

    # --- small case: single-tile grid (B=8, D=32), exact f32 MXU feed ---
    img_s = jax.random.normal(k1, (8, 32), dtype=jnp.float32)
    txt_s = jax.random.normal(k2, (8, 32), dtype=jnp.float32)
    loss_s = contrastive_loss_with_temperature_pallas(
        img_s, txt_s, logit_scale, mxu_dtype=jnp.float32)
    jax.block_until_ready(loss_s)
    ref_s = _reference_loss(img_s, txt_s, logit_scale)
    assert jnp.allclose(loss_s, ref_s, rtol=1e-4, atol=1e-4), (loss_s, ref_s)

    # --- tiled case A: 2x2 grid, default bf16 MXU feed, resident text ---
    def _normalize(x):
        return x / jnp.linalg.norm(x, axis=-1, keepdims=True)

    img_u = jax.random.normal(k3, (256, 128), dtype=jnp.float32)
    txt_u = jax.random.normal(k4, (256, 128), dtype=jnp.float32)
    img_n = _normalize(img_u)
    txt_n = _normalize(txt_u)

    loss_bf = contrastive_loss_with_temperature_pallas(
        img_n, txt_n, logit_scale, block_b=128)
    jax.block_until_ready(loss_bf)
    # Reference from bf16-quantized inputs mirrors the MXU feed precision.
    ref_bf = _reference_loss(img_n.astype(jnp.bfloat16).astype(jnp.float32),
                             txt_n.astype(jnp.bfloat16).astype(jnp.float32),
                             logit_scale)
    assert jnp.allclose(loss_bf, ref_bf, rtol=3e-2, atol=3e-2), (loss_bf, ref_bf)

    # --- tiled case B: streaming (non-resident) text path, exact f32 ---
    loss_f32 = contrastive_loss_with_temperature_pallas(
        img_u, txt_u, logit_scale, block_b=128,
        mxu_dtype=jnp.float32, txt_resident=False)
    jax.block_until_ready(loss_f32)
    ref_f32 = _reference_loss(img_u, txt_u, logit_scale)
    assert jnp.allclose(loss_f32, ref_f32, rtol=1e-4, atol=1e-4), (loss_f32, ref_f32)

    print("KERNEL_OK")
</pallas_src>

<mosaic_0001>
module attributes {stable_mosaic.version = 11 : i64} {
  func.func @kernel(%arg0: i32, %arg1: i32, %arg2: memref<1xf32, #tpu.memory_space<smem>>, %arg3: memref<8x32xf32, #tpu.memory_space<vmem>>, %arg4: memref<8x32xf32, #tpu.memory_space<vmem>>, %arg5: memref<1x1xf32, #tpu.memory_space<vmem>>, %arg6: memref<8x32xf32, #tpu.memory_space<vmem>>, %arg7: memref<8x1xf32, #tpu.memory_space<vmem>>, %arg8: memref<8x1xf32, #tpu.memory_space<vmem>>, %arg9: memref<1x1x8xf32, #tpu.memory_space<vmem>>, %arg10: memref<1x1x8xf32, #tpu.memory_space<vmem>>, %arg11: memref<1x1xf32, #tpu.memory_space<vmem>>, %arg12: memref<1x1xf32, #tpu.memory_space<vmem>>, %arg13: memref<1x1xf32, #tpu.memory_space<vmem>>) attributes {dimension_semantics = [#tpu.dimension_semantics<arbitrary>, #tpu.dimension_semantics<arbitrary>], iteration_bounds = array<i64: 1, 1>, scalar_prefetch = 0 : i64, scratch_operands = 8 : i64, tpu.core_type = #tpu.core_type<tc>, window_params = [{transform_indices = @transform_0, window_bounds = array<i64: 1>}, {transform_indices = @transform_1, window_bounds = array<i64: 8, 32>}, {pipeline_mode = #tpu.pipeline_mode<synchronous>, transform_indices = @transform_2, window_bounds = array<i64: 8, 32>}, {pipeline_mode = #tpu.pipeline_mode<synchronous>, transform_indices = @transform_3, window_bounds = array<i64: 1, 1>}]} {
    %c0_i32 = arith.constant 0 : i32
    %0 = arith.cmpi eq, %arg0, %c0_i32 : i32
    %c0_i32_0 = arith.constant 0 : i32
    %1 = arith.cmpi eq, %arg1, %c0_i32_0 : i32
    %2 = arith.andi %0, %1 : i1
    %3 = arith.extui %2 : i1 to i32
    %c0_i32_1 = arith.constant 0 : i32
    %4 = arith.cmpi ne, %3, %c0_i32_1 : i32
    scf.if %4 {
      %cst_36 = arith.constant 0.000000e+00 : f32
      %73 = vector.broadcast %cst_36 : f32 to vector<1x1xf32>
      %c0_37 = arith.constant 0 : index
      %c0_38 = arith.constant 0 : index
      %74 = vector.load %arg11[%c0_37, %c0_38] : memref<1x1xf32, #tpu.memory_space<vmem>>, vector<1x1xf32>
      tpu.vector_store %arg11[%c0_37, %c0_38], %73 {strides = array<i32>} : memref<1x1xf32, #tpu.memory_space<vmem>>, vector<1x1xf32>,
      %cst_39 = arith.constant 0.000000e+00 : f32
      %75 = vector.broadcast %cst_39 : f32 to vector<1x1xf32>
      %c0_40 = arith.constant 0 : index
      %c0_41 = arith.constant 0 : index
      %76 = vector.load %arg12[%c0_40, %c0_41] : memref<1x1xf32, #tpu.memory_space<vmem>>, vector<1x1xf32>
      tpu.vector_store %arg12[%c0_40, %c0_41], %75 {strides = array<i32>} : memref<1x1xf32, #tpu.memory_space<vmem>>, vector<1x1xf32>,
      %cst_42 = arith.constant 0.000000e+00 : f32
      %77 = vector.broadcast %cst_42 : f32 to vector<1x1xf32>
      %c0_43 = arith.constant 0 : index
      %c0_44 = arith.constant 0 : index
      %78 = vector.load %arg13[%c0_43, %c0_44] : memref<1x1xf32, #tpu.memory_space<vmem>>, vector<1x1xf32>
      tpu.vector_store %arg13[%c0_43, %c0_44], %77 {strides = array<i32>} : memref<1x1xf32, #tpu.memory_space<vmem>>, vector<1x1xf32>,
    } else {
    }
    %c0_i32_2 = arith.constant 0 : i32
    %5 = arith.cmpi eq, %arg1, %c0_i32_2 : i32
    %6 = arith.extui %5 : i1 to i32
    %c0_i32_3 = arith.constant 0 : i32
    %7 = arith.cmpi ne, %6, %c0_i32_3 : i32
    scf.if %7 {
      %c0_36 = arith.constant 0 : index
      %c0_37 = arith.constant 0 : index
      %73 = vector.load %arg3[%c0_36, %c0_37] : memref<8x32xf32, #tpu.memory_space<vmem>>, vector<8x32xf32>
      %c0_38 = arith.constant 0 : index
      %74 = memref.load %arg2[%c0_38] : memref<1xf32, #tpu.memory_space<smem>>
      %75 = vector.broadcast %74 : f32 to vector<8x32xf32>
      %76 = arith.mulf %73, %75 : vector<8x32xf32>
      %c0_39 = arith.constant 0 : index
      %c0_40 = arith.constant 0 : index
      %77 = vector.load %arg6[%c0_39, %c0_40] : memref<8x32xf32, #tpu.memory_space<vmem>>, vector<8x32xf32>
      tpu.vector_store %arg6[%c0_39, %c0_40], %76 {strides = array<i32>} : memref<8x32xf32, #tpu.memory_space<vmem>>, vector<8x32xf32>,
      %cst_41 = arith.constant 0xFF800000 : f32
      %78 = vector.broadcast %cst_41 : f32 to vector<8x1xf32>
      %c0_42 = arith.constant 0 : index
      %c0_43 = arith.constant 0 : index
      %79 = vector.load %arg7[%c0_42, %c0_43] : memref<8x1xf32, #tpu.memory_space<vmem>>, vector<8x1xf32>
      tpu.vector_store %arg7[%c0_42, %c0_43], %78 {strides = array<i32>} : memref<8x1xf32, #tpu.memory_space<vmem>>, vector<8x1xf32>,
      %cst_44 = arith.constant 0.000000e+00 : f32
      %80 = vector.broadcast %cst_44 : f32 to vector<8x1xf32>
      %c0_45 = arith.constant 0 : index
      %c0_46 = arith.constant 0 : index
      %81 = vector.load %arg8[%c0_45, %c0_46] : memref<8x1xf32, #tpu.memory_space<vmem>>, vector<8x1xf32>
      tpu.vector_store %arg8[%c0_45, %c0_46], %80 {strides = array<i32>} : memref<8x1xf32, #tpu.memory_space<vmem>>, vector<8x1xf32>,
    } else {
    }
    %c0_i32_4 = arith.constant 0 : i32
    %8 = arith.cmpi eq, %arg0, %c0_i32_4 : i32
    %9 = arith.extui %8 : i1 to i32
    %c0_i32_5 = arith.constant 0 : i32
    %10 = arith.cmpi ne, %9, %c0_i32_5 : i32
    scf.if %10 {
      %cst_36 = arith.constant 0xFF800000 : f32
      %73 = vector.broadcast %cst_36 : f32 to vector<1x8xf32>
      %74 = arith.index_cast %arg1 : i32 to index
      %c0_37 = arith.constant 0 : index
      %c0_38 = arith.constant 0 : index
      %75 = vector.load %arg9[%74, %c0_37, %c0_38] : memref<1x1x8xf32, #tpu.memory_space<vmem>>, vector<1x1x8xf32>
      %76 = vector.shape_cast %75 : vector<1x1x8xf32> to vector<1x8xf32>
      %77 = vector.shape_cast %73 : vector<1x8xf32> to vector<1x1x8xf32>
      tpu.vector_store %arg9[%74, %c0_37, %c0_38], %77 {strides = array<i32>} : memref<1x1x8xf32, #tpu.memory_space<vmem>>, vector<1x1x8xf32>,
      %cst_39 = arith.constant 0.000000e+00 : f32
      %78 = vector.broadcast %cst_39 : f32 to vector<1x8xf32>
      %79 = arith.index_cast %arg1 : i32 to index
      %c0_40 = arith.constant 0 : index
      %c0_41 = arith.constant 0 : index
      %80 = vector.load %arg10[%79, %c0_40, %c0_41] : memref<1x1x8xf32, #tpu.memory_space<vmem>>, vector<1x1x8xf32>
      %81 = vector.shape_cast %80 : vector<1x1x8xf32> to vector<1x8xf32>
      %82 = vector.shape_cast %78 : vector<1x8xf32> to vector<1x1x8xf32>
      tpu.vector_store %arg10[%79, %c0_40, %c0_41], %82 {strides = array<i32>} : memref<1x1x8xf32, #tpu.memory_space<vmem>>, vector<1x1x8xf32>,
    } else {
    }
    %c8_i32 = arith.constant 8 : i32
    %11 = arith.muli %arg1, %c8_i32 : i32
    %12 = tpu.assume_multiple %11, 8 : i32
    %13 = arith.index_cast %12 : i32 to index
    %c0 = arith.constant 0 : index
    %14 = vector.load %arg4[%13, %c0] : memref<8x32xf32, #tpu.memory_space<vmem>>, vector<8x32xf32>
    %c0_6 = arith.constant 0 : index
    %c0_7 = arith.constant 0 : index
    %15 = vector.load %arg6[%c0_6, %c0_7] : memref<8x32xf32, #tpu.memory_space<vmem>>, vector<8x32xf32>
    %cst = arith.constant dense<0.000000e+00> : vector<8x8xf32>
    %16 = tpu.matmul %15, %14, %cst {dimension_numbers = #tpu.dot_dimension_numbers<[1], [1], [0], [0], [0, 0, 1, 0], [], []>} : vector<8x32xf32>, vector<8x32xf32>, vector<8x8xf32> -> vector<8x8xf32>
    %c0_8 = arith.constant 0 : index
    %c0_9 = arith.constant 0 : index
    %17 = vector.load %arg7[%c0_8, %c0_9] : memref<8x1xf32, #tpu.memory_space<vmem>>, vector<8x1xf32>
    %cst_10 = arith.constant dense<0xFF800000> : vector<8xf32>
    %18 = vector.multi_reduction <maximumf>, %16, %cst_10 [1] : vector<8x8xf32> to vector<8xf32>
    %19 = vector.shape_cast %18 : vector<8xf32> to vector<8x1xf32>
    %20 = arith.maximumf %17, %19 : vector<8x1xf32>
    %c0_11 = arith.constant 0 : index
    %c0_12 = arith.constant 0 : index
    %21 = vector.load %arg8[%c0_11, %c0_12] : memref<8x1xf32, #tpu.memory_space<vmem>>, vector<8x1xf32>
    %22 = arith.subf %17, %20 : vector<8x1xf32>
    %23 = math.exp %22 : vector<8x1xf32>
    %24 = arith.mulf %21, %23 : vector<8x1xf32>
    %25 = vector.broadcast %20 : vector<8x1xf32> to vector<8x8xf32>
    %26 = arith.subf %16, %25 : vector<8x8xf32>
    %27 = math.exp %26 : vector<8x8xf32>
    %cst_13 = arith.constant dense<0.000000e+00> : vector<8xf32>
    %28 = vector.multi_reduction <add>, %27, %cst_13 [1] : vector<8x8xf32> to vector<8xf32>
    %29 = vector.shape_cast %28 : vector<8xf32> to vector<8x1xf32>
    %30 = arith.addf %24, %29 : vector<8x1xf32>
    %c0_14 = arith.constant 0 : index
    %c0_15 = arith.constant 0 : index
    %31 = vector.load %arg8[%c0_14, %c0_15] : memref<8x1xf32, #tpu.memory_space<vmem>>, vector<8x1xf32>
    tpu.vector_store %arg8[%c0_14, %c0_15], %30 {strides = array<i32>} : memref<8x1xf32, #tpu.memory_space<vmem>>, vector<8x1xf32>,
    %c0_16 = arith.constant 0 : index
    %c0_17 = arith.constant 0 : index
    %32 = vector.load %arg7[%c0_16, %c0_17] : memref<8x1xf32, #tpu.memory_space<vmem>>, vector<8x1xf32>
    tpu.vector_store %arg7[%c0_16, %c0_17], %20 {strides = array<i32>} : memref<8x1xf32, #tpu.memory_space<vmem>>, vector<8x1xf32>,
    %33 = arith.index_cast %arg1 : i32 to index
    %c0_18 = arith.constant 0 : index
    %c0_19 = arith.constant 0 : index
    %34 = vector.load %arg9[%33, %c0_18, %c0_19] : memref<1x1x8xf32, #tpu.memory_space<vmem>>, vector<1x1x8xf32>
    %35 = vector.shape_cast %34 : vector<1x1x8xf32> to vector<1x8xf32>
    %cst_20 = arith.constant dense<0xFF800000> : vector<8xf32>
    %36 = vector.multi_reduction <maximumf>, %16, %cst_20 [0] : vector<8x8xf32> to vector<8xf32>
    %37 = vector.shape_cast %36 : vector<8xf32> to vector<1x8xf32>
    %38 = arith.maximumf %35, %37 : vector<1x8xf32>
    %39 = arith.index_cast %arg1 : i32 to index
    %c0_21 = arith.constant 0 : index
    %c0_22 = arith.constant 0 : index
    %40 = vector.load %arg10[%39, %c0_21, %c0_22] : memref<1x1x8xf32, #tpu.memory_space<vmem>>, vector<1x1x8xf32>
    %41 = vector.shape_cast %40 : vector<1x1x8xf32> to vector<1x8xf32>
    %42 = arith.subf %35, %38 : vector<1x8xf32>
    %43 = math.exp %42 : vector<1x8xf32>
    %44 = arith.mulf %41, %43 : vector<1x8xf32>
    %45 = vector.broadcast %38 : vector<1x8xf32> to vector<8x8xf32>
    %46 = arith.subf %16, %45 : vector<8x8xf32>
    %47 = math.exp %46 : vector<8x8xf32>
    %cst_23 = arith.constant dense<0.000000e+00> : vector<8xf32>
    %48 = vector.multi_reduction <add>, %47, %cst_23 [0] : vector<8x8xf32> to vector<8xf32>
    %49 = vector.shape_cast %48 : vector<8xf32> to vector<1x8xf32>
    %50 = arith.addf %44, %49 : vector<1x8xf32>
    %51 = arith.index_cast %arg1 : i32 to index
    %c0_24 = arith.constant 0 : index
    %c0_25 = arith.constant 0 : index
    %52 = vector.load %arg10[%51, %c0_24, %c0_25] : memref<1x1x8xf32, #tpu.memory_space<vmem>>, vector<1x1x8xf32>
    %53 = vector.shape_cast %52 : vector<1x1x8xf32> to vector<1x8xf32>
    %54 = vector.shape_cast %50 : vector<1x8xf32> to vector<1x1x8xf32>
    tpu.vector_store %arg10[%51, %c0_24, %c0_25], %54 {strides = array<i32>} : memref<1x1x8xf32, #tpu.memory_space<vmem>>, vector<1x1x8xf32>,
    %55 = arith.index_cast %arg1 : i32 to index
    %c0_26 = arith.constant 0 : index
    %c0_27 = arith.constant 0 : index
    %56 = vector.load %arg9[%55, %c0_26, %c0_27] : memref<1x1x8xf32, #tpu.memory_space<vmem>>, vector<1x1x8xf32>
    %57 = vector.shape_cast %56 : vector<1x1x8xf32> to vector<1x8xf32>
    %58 = vector.shape_cast %38 : vector<1x8xf32> to vector<1x1x8xf32>
    tpu.vector_store %arg9[%55, %c0_26, %c0_27], %58 {strides = array<i32>} : memref<1x1x8xf32, #tpu.memory_space<vmem>>, vector<1x1x8xf32>,
    %59 = arith.cmpi eq, %arg0, %arg1 : i32
    %60 = arith.extui %59 : i1 to i32
    %c0_i32_28 = arith.constant 0 : i32
    %61 = arith.cmpi ne, %60, %c0_i32_28 : i32
    scf.if %61 {
      %73 = tpu.iota {dimensions = array<i32: 0>} : vector<8x8xi32>
      %74 = tpu.iota {dimensions = array<i32: 1>} : vector<8x8xi32>
      %75 = arith.cmpi eq, %73, %74 : vector<8x8xi32>
      %cst_36 = arith.constant 0.000000e+00 : f32
      %76 = vector.broadcast %cst_36 : f32 to vector<8x8xf32>
      %77 = arith.select %75, %16, %76 : vector<8x8xi1>, vector<8x8xf32>
      %c0_37 = arith.constant 0 : index
      %c0_38 = arith.constant 0 : index
      %78 = vector.load %arg13[%c0_37, %c0_38] : memref<1x1xf32, #tpu.memory_space<vmem>>, vector<1x1xf32>
      %cst_39 = arith.constant dense<0.000000e+00> : vector<8xf32>
      %79 = vector.multi_reduction <add>, %77, %cst_39 [1] : vector<8x8xf32> to vector<8xf32>
      %80 = vector.shape_cast %79 : vector<8xf32> to vector<8x1xf32>
      %cst_40 = arith.constant dense<0.000000e+00> : vector<1xf32>
      %81 = vector.multi_reduction <add>, %80, %cst_40 [0] : vector<8x1xf32> to vector<1xf32>
      %82 = vector.shape_cast %81 : vector<1xf32> to vector<1x1xf32>
      %83 = arith.addf %78, %82 : vector<1x1xf32>
      %c0_41 = arith.constant 0 : index
      %c0_42 = arith.constant 0 : index
      %84 = vector.load %arg13[%c0_41, %c0_42] : memref<1x1xf32, #tpu.memory_space<vmem>>, vector<1x1xf32>
      tpu.vector_store %arg13[%c0_41, %c0_42], %83 {strides = array<i32>} : memref<1x1xf32, #tpu.memory_space<vmem>>, vector<1x1xf32>,
    } else {
    }
    %c0_i32_29 = arith.constant 0 : i32
    %62 = arith.cmpi eq, %arg1, %c0_i32_29 : i32
    %63 = arith.extui %62 : i1 to i32
    %c0_i32_30 = arith.constant 0 : i32
    %64 = arith.cmpi ne, %63, %c0_i32_30 : i32
    scf.if %64 {
      %c0_36 = arith.constant 0 : index
      %c0_37 = arith.constant 0 : index
      %73 = vector.load %arg7[%c0_36, %c0_37] : memref<8x1xf32, #tpu.memory_space<vmem>>, vector<8x1xf32>
      %c0_38 = arith.constant 0 : index
      %c0_39 = arith.constant 0 : index
      %74 = vector.load %arg8[%c0_38, %c0_39] : memref<8x1xf32, #tpu.memory_space<vmem>>, vector<8x1xf32>
      %75 = math.log %74 : vector<8x1xf32>
      %76 = arith.addf %73, %75 : vector<8x1xf32>
      %c0_40 = arith.constant 0 : index
      %c0_41 = arith.constant 0 : index
      %77 = vector.load %arg11[%c0_40, %c0_41] : memref<1x1xf32, #tpu.memory_space<vmem>>, vector<1x1xf32>
      %cst_42 = arith.constant dense<0.000000e+00> : vector<1xf32>
      %78 = vector.multi_reduction <add>, %76, %cst_42 [0] : vector<8x1xf32> to vector<1xf32>
      %79 = vector.shape_cast %78 : vector<1xf32> to vector<1x1xf32>
      %80 = arith.addf %77, %79 : vector<1x1xf32>
      %c0_43 = arith.constant 0 : index
      %c0_44 = arith.constant 0 : index
      %81 = vector.load %arg11[%c0_43, %c0_44] : memref<1x1xf32, #tpu.memory_space<vmem>>, vector<1x1xf32>
      tpu.vector_store %arg11[%c0_43, %c0_44], %80 {strides = array<i32>} : memref<1x1xf32, #tpu.memory_space<vmem>>, vector<1x1xf32>,
    } else {
    }
    %c0_i32_31 = arith.constant 0 : i32
    %65 = arith.cmpi eq, %arg0, %c0_i32_31 : i32
    %66 = arith.extui %65 : i1 to i32
    %c0_i32_32 = arith.constant 0 : i32
    %67 = arith.cmpi ne, %66, %c0_i32_32 : i32
    scf.if %67 {
      %73 = arith.index_cast %arg1 : i32 to index
      %c0_36 = arith.constant 0 : index
      %c0_37 = arith.constant 0 : index
      %74 = vector.load %arg9[%73, %c0_36, %c0_37] : memref<1x1x8xf32, #tpu.memory_space<vmem>>, vector<1x1x8xf32>
      %75 = vector.shape_cast %74 : vector<1x1x8xf32> to vector<1x8xf32>
      %76 = arith.index_cast %arg1 : i32 to index
      %c0_38 = arith.constant 0 : index
      %c0_39 = arith.constant 0 : index
      %77 = vector.load %arg10[%76, %c0_38, %c0_39] : memref<1x1x8xf32, #tpu.memory_space<vmem>>, vector<1x1x8xf32>
      %78 = vector.shape_cast %77 : vector<1x1x8xf32> to vector<1x8xf32>
      %79 = math.log %78 : vector<1x8xf32>
      %80 = arith.addf %75, %79 : vector<1x8xf32>
      %c0_40 = arith.constant 0 : index
      %c0_41 = arith.constant 0 : index
      %81 = vector.load %arg12[%c0_40, %c0_41] : memref<1x1xf32, #tpu.memory_space<vmem>>, vector<1x1xf32>
      %cst_42 = arith.constant dense<0.000000e+00> : vector<1xf32>
      %82 = vector.multi_reduction <add>, %80, %cst_42 [1] : vector<1x8xf32> to vector<1xf32>
      %83 = vector.shape_cast %82 : vector<1xf32> to vector<1x1xf32>
      %84 = arith.addf %81, %83 : vector<1x1xf32>
      %c0_43 = arith.constant 0 : index
      %c0_44 = arith.constant 0 : index
      %85 = vector.load %arg12[%c0_43, %c0_44] : memref<1x1xf32, #tpu.memory_space<vmem>>, vector<1x1xf32>
      tpu.vector_store %arg12[%c0_43, %c0_44], %84 {strides = array<i32>} : memref<1x1xf32, #tpu.memory_space<vmem>>, vector<1x1xf32>,
    } else {
    }
    %c0_i32_33 = arith.constant 0 : i32
    %68 = arith.cmpi eq, %arg0, %c0_i32_33 : i32
    %c0_i32_34 = arith.constant 0 : i32
    %69 = arith.cmpi eq, %arg1, %c0_i32_34 : i32
    %70 = arith.andi %68, %69 : i1
    %71 = arith.extui %70 : i1 to i32
    %c0_i32_35 = arith.constant 0 : i32
    %72 = arith.cmpi ne, %71, %c0_i32_35 : i32
    scf.if %72 {
      %c0_36 = arith.constant 0 : index
      %c0_37 = arith.constant 0 : index
      %73 = vector.load %arg11[%c0_36, %c0_37] : memref<1x1xf32, #tpu.memory_space<vmem>>, vector<1x1xf32>
      %c0_38 = arith.constant 0 : index
      %c0_39 = arith.constant 0 : index
      %74 = vector.load %arg12[%c0_38, %c0_39] : memref<1x1xf32, #tpu.memory_space<vmem>>, vector<1x1xf32>
      %75 = arith.addf %73, %74 : vector<1x1xf32>
      %c0_40 = arith.constant 0 : index
      %c0_41 = arith.constant 0 : index
      %76 = vector.load %arg13[%c0_40, %c0_41] : memref<1x1xf32, #tpu.memory_space<vmem>>, vector<1x1xf32>
      %cst_42 = arith.constant 2.000000e+00 : f32
      %77 = vector.broadcast %cst_42 : f32 to vector<1x1xf32>
      %78 = arith.mulf %77, %76 : vector<1x1xf32>
      %79 = arith.subf %75, %78 : vector<1x1xf32>
      %cst_43 = arith.constant 6.250000e-02 : f32
      %80 = vector.broadcast %cst_43 : f32 to vector<1x1xf32>
      %81 = arith.mulf %80, %79 : vector<1x1xf32>
      %c0_44 = arith.constant 0 : index
      %c0_45 = arith.constant 0 : index
      %82 = vector.load %arg5[%c0_44, %c0_45] : memref<1x1xf32, #tpu.memory_space<vmem>>, vector<1x1xf32>
      tpu.vector_store %arg5[%c0_44, %c0_45], %81 {strides = array<i32>} : memref<1x1xf32, #tpu.memory_space<vmem>>, vector<1x1xf32>,
    } else {
    }
    return
  }
  func.func @transform_0(%arg0: i32, %arg1: i32) -> i32 {
    %c0_i32 = arith.constant 0 : i32
    %c0_i32_0 = arith.constant 0 : i32
    return %c0_i32 : i32
  }
  func.func @transform_1(%arg0: i32, %arg1: i32) -> (i32, i32) {
    %c0_i32 = arith.constant 0 : i32
    %c0_i32_0 = arith.constant 0 : i32
    return %arg0, %c0_i32 : i32, i32
  }
  func.func @transform_2(%arg0: i32, %arg1: i32) -> (i32, i32) {
    %c0_i32 = arith.constant 0 : i32
    %c0_i32_0 = arith.constant 0 : i32
    %c0_i32_1 = arith.constant 0 : i32
    return %c0_i32, %c0_i32_0 : i32, i32
  }
  func.func @transform_3(%arg0: i32, %arg1: i32) -> (i32, i32) {
    %c0_i32 = arith.constant 0 : i32
    %c0_i32_0 = arith.constant 0 : i32
    %c0_i32_1 = arith.constant 0 : i32
    return %c0_i32, %c0_i32_0 : i32, i32
  }
}

</mosaic_0001>

<llo_original>
// kernel: tpu_custom_call.1
$region0: #{tpu_custom_call.1}
  #allocation0 [shape = 'u32[]', space=smem, size = 0x4, offset = 0x4, fixed_abs, tag = 'smem constant byte address 0x4 - core index']
  #allocation1 [shape = 'u32[144,128]{1,0:T(1,128)}', space=vmem, size = 0x12000, scoped, tag = 'internal scratch']
  #allocation2 [shape = 'f32[8,32]{1,0:T(8,128)}', space=vmem, size = 0x1000, scoped, tag = 'scratch operand']
  #allocation3 [shape = 'f32[8,1]{1,0:T(8,128)}', space=vmem, size = 0x1000, scoped, tag = 'scratch operand']
  #allocation4 [shape = 'f32[8,1]{1,0:T(8,128)}', space=vmem, size = 0x1000, scoped, tag = 'scratch operand']
  #allocation5 [shape = 'f32[1,1,8]{2,1,0:T(1,128)}', space=vmem, size = 0x200, scoped, tag = 'scratch operand']
  #allocation6 [shape = 'f32[1,1,8]{2,1,0:T(1,128)}', space=vmem, size = 0x200, scoped, tag = 'scratch operand']
  #allocation7 [shape = 'f32[1,1]{1,0:T(1,128)}', space=vmem, size = 0x200, scoped, tag = 'scratch operand']
  #allocation8 [shape = 'f32[1,1]{1,0:T(1,128)}', space=vmem, size = 0x200, scoped, tag = 'scratch operand']
  #allocation9 [shape = 'f32[1,1]{1,0:T(1,128)}', space=vmem, size = 0x200, scoped, tag = 'scratch operand']
  #allocation10 [shape = 'f32[1]{0:T(128)S(6)}', space=smem, size = 0x200, scoped, tag = 'scoped memory for tpu_custom_call.1']
  %s0 = inlined_call_operand.<no memory space> [shape: f32[1], index: 0, kind: input, shape index: {}]
  %s1 = inlined_call_operand.hbm [shape: f32[8,32], index: 1, kind: input, shape index: {}]
  %s2 = inlined_call_operand.hbm [shape: f32[8,32], index: 2, kind: input, shape index: {}]
  %s3 = inlined_call_operand.hbm [shape: f32[1,1], index: 3, kind: output, shape index: {}]
  %s4 = sld [smem:[#allocation0]]
  $region58: #{tpu_custom_call.1} parent=0
    _
  %s6 = ssub.s32 1, %s4
  %s7 = scalar_select 0, %s6, %s4
  %8 = sst [smem:[#allocation10]] %s0
  $region1: #{tpu_custom_call.1} parent=0
    #allocation11 [shape = 'u8[4096]{0}', space=vmem, size = 0x1000, scoped, tag = 'input window, operand 1, single buffered']
    #allocation12 [shape = 's32[1]{0}', space=sflag, size = 0x4, scoped, tag = 'scoped memory for tpu_custom_call.1']
    #allocation13 [shape = 's32[1]{0}', space=sflag, size = 0x4, scoped, tag = 'scoped memory for tpu_custom_call.1']
    #allocation14 [shape = 'u8[4096]{0}', space=vmem, size = 0x1000, scoped, tag = 'input window, operand 2, single buffered']
    #allocation15 [shape = 's32[1]{0}', space=sflag, size = 0x4, scoped, tag = 'scoped memory for tpu_custom_call.1']
    #allocation16 [shape = 'u8[512]{0}', space=vmem, size = 0x400, scoped, tag = 'output window, operand 0, single buffered']
    %9 = vsyncpa [#allocation12], 0
    %10 = vsyncpa [#allocation15], 0
    %11 = vsyncpa [#allocation13], 0
    // Predicated region
    $region2: #{tpu_custom_call.1} parent=1 // pred_check
      _
    $region3: #{tpu_custom_call.1} parent=1 // pred_check_branch
      %13 = sbr.rel (0) target = $region5
    $region4: #{tpu_custom_call.1} parent=1 // pred_region
      _
    $region5: #{tpu_custom_call.1} parent=1 // pred_fallthru
      _
    // Predicated region
    $region6: #{tpu_custom_call.1} parent=1 // pred_check
      _
    $region7: #{tpu_custom_call.1} parent=1 // pred_check_branch
      %15 = sbr.rel (0) target = $region9
    $region8: #{tpu_custom_call.1} parent=1 // pred_region
      %s17 = ssub.s32 128, 128
      %18 = vsyncadd [#allocation12], %s17
      %s20 = sshll.u32 [#allocation11], 4
      %s21 = int_to_ptr.vmem [resolvable:$true] %s20
      %23 = dma.hbm_to_vmem [thread:$0]  %s1, 128, %s21, [#allocation12]
    $region9: #{tpu_custom_call.1} parent=1 // pred_fallthru
      _
    // Predicated region
    $region10: #{tpu_custom_call.1} parent=1 // pred_check
      _
    $region11: #{tpu_custom_call.1} parent=1 // pred_check_branch
      %25 = sbr.rel (0) target = $region13
    $region12: #{tpu_custom_call.1} parent=1 // pred_region
      %s27 = ssub.s32 128, 128
      %28 = vsyncadd [#allocation15], %s27
      %s30 = sshll.u32 [#allocation14], 4
      %s31 = int_to_ptr.vmem [resolvable:$true] %s30
      %33 = dma.hbm_to_vmem [thread:$0]  %s2, 128, %s31, [#allocation15]
    $region13: #{tpu_custom_call.1} parent=1 // pred_fallthru
      _
    // Predicated region
    $region14: #{tpu_custom_call.1} parent=1 // pred_check
      _
    $region15: #{tpu_custom_call.1} parent=1 // pred_check_branch
      %35 = sbr.rel (0) target = $region17
    $region16: #{tpu_custom_call.1} parent=1 // pred_region
      %36 = dma.done [#allocation12], 128
    $region17: #{tpu_custom_call.1} parent=1 // pred_fallthru
      _
    // Predicated region
    $region18: #{tpu_custom_call.1} parent=1 // pred_check
      _
    $region19: #{tpu_custom_call.1} parent=1 // pred_check_branch
      %38 = sbr.rel (0) target = $region21
    $region20: #{tpu_custom_call.1} parent=1 // pred_region
      %39 = dma.done [#allocation15], 128
    $region21: #{tpu_custom_call.1} parent=1 // pred_fallthru
      _
    %p40 = scmp.eq.s32.totalorder 0, 0
    %p41 = scmp.eq.s32.totalorder 0, 0
    %p42 = pnand %p40, %p41
    %p43 = pneg %p42
    // Predicated region
    $region22: #{tpu_custom_call.1} parent=1 // pred_check
      _
    $region23: #{tpu_custom_call.1} parent=1 // pred_check_branch
      %45 = sbr.rel (%p42) target = $region25
    $region24: #{tpu_custom_call.1} parent=1 // pred_region
      %vm46 = vcmask 0
      %47 = vst.msk [vmem:[#allocation7] sm:$0x1] %vm46, 0.0
      %48 = vst.msk [vmem:[#allocation8] sm:$0x1] %vm46, 0.0
      %49 = vst.msk [vmem:[#allocation9] sm:$0x1] %vm46, 0.0
    $region25: #{tpu_custom_call.1} parent=1 // pred_fallthru
      _
    // Predicated region
    $region26: #{tpu_custom_call.1} parent=1 // pred_check
      %p50 = pneg %p41
    $region27: #{tpu_custom_call.1} parent=1 // pred_check_branch
      %52 = sbr.rel (%p50) target = $region29
    $region28: #{tpu_custom_call.1} parent=1 // pred_region
      %v53 = vld [vmem:[#allocation11] sm:$0xff]
      %s54 = sld [smem:[#allocation10]]
      %v55 = vstv %s54
      %v56 = vmul.f32 %v53, %v55
      %vm57 = vcmask 261120
      %58 = vst.msk [vmem:[#allocation2] sm:$0xff] %vm57, %v56
      %vm59 = vcmask 7168
      %60 = vst.msk [vmem:[#allocation3] sm:$0xff] %vm59, -inf
      %61 = vst.msk [vmem:[#allocation4] sm:$0xff] %vm59, 0.0
    $region29: #{tpu_custom_call.1} parent=1 // pred_fallthru
      _
    // Predicated region
    $region30: #{tpu_custom_call.1} parent=1 // pred_check
      %p62 = pneg %p40
    $region31: #{tpu_custom_call.1} parent=1 // pred_check_branch
      %64 = sbr.rel (%p62) target = $region33
    $region32: #{tpu_custom_call.1} parent=1 // pred_region
      %vm65 = vcmask 57344
      %66 = vst.msk [vmem:[#allocation5] sm:$0x1] %vm65, -inf
      %67 = vst.msk [vmem:[#allocation6] sm:$0x1] %vm65, 0.0
    $region33: #{tpu_custom_call.1} parent=1 // pred_fallthru
      _
    %s68 = smul.u32 0, 8
    %s69 = scalar_lea.vmem [#allocation14], %s68
    %v70 = vld [vmem:[%s69] sm:$0xff]
    %v71 = vld [vmem:[#allocation2] sm:$0xff]
    %vm72 = vcmask 261120
    %v74 = vsel %vm72, %v71, 0
    %v77 = vsel %vm72, %v70, 0
    %79 = vmatprep.subr.mxu0 0.0
    %80 = vmatpush1.xpose.msra.mxu0 %v77
    %81 = vmatprep.subr.mxu0 0.0
    %82 = vmatpush1.xpose.msra.mxu0 0.0
    %83 = vmatprep.subr.mxu0 0.0
    %84 = vmatpush1.xpose.msra.mxu0 0.0
    %85 = vmatprep.subr.mxu0 0.0
    %86 = vmatpush1.xpose.msra.mxu0 0.0
    %87 = vmatprep.subr.mxu0 0.0
    %88 = vmatpush1.xpose.msra.mxu0 0.0
    %89 = vmatprep.subr.mxu0 0.0
    %90 = vmatpush1.xpose.msra.mxu0 0.0
    %91 = vmatprep.subr.mxu0 0.0
    %92 = vmatpush1.xpose.msra.mxu0 0.0
    %93 = vmatprep.subr.mxu0 0.0
    %94 = vmatpush1.xpose.msra.mxu0 0.0
    %95 = vmatprep.subr.mxu0 0.0
    %96 = vmatpush1.xpose.msra.mxu0 0.0
    %97 = vmatprep.subr.mxu0 0.0
    %98 = vmatpush1.xpose.msra.mxu0 0.0
    %99 = vmatprep.subr.mxu0 0.0
    %100 = vmatpush1.xpose.msra.mxu0 0.0
    %101 = vmatprep.subr.mxu0 0.0
    %102 = vmatpush1.xpose.msra.mxu0 0.0
    %103 = vmatprep.subr.mxu0 0.0
    %104 = vmatpush1.xpose.msra.mxu0 0.0
    %105 = vmatprep.subr.mxu0 0.0
    %106 = vmatpush1.xpose.msra.mxu0 0.0
    %107 = vmatprep.subr.mxu0 0.0
    %108 = vmatpush1.xpose.msra.mxu0 0.0
    %109 = vmatprep.subr.mxu0 0.0
    %110 = vmatpush1.xpose.msra.mxu0 0.0
    %111 = vmatprep.subr.mxu0 0.0
    %112 = vmatpush1.xpose.msra.mxu0 0.0
    %113 = vmatprep.subr.mxu0 0.0
    %114 = vmatpush1.xpose.msra.mxu0 0.0
    %115 = vmatprep.subr.mxu0 0.0
    %116 = vmatpush1.xpose.msra.mxu0 0.0
    %117 = vmatprep.subr.mxu0 0.0
    %118 = vmatpush1.xpose.msra.mxu0 0.0
    %119 = vmatprep.subr.mxu0 0.0
    %120 = vmatpush1.xpose.msra.mxu0 0.0
    %121 = vmatprep.subr.mxu0 0.0
    %122 = vmatpush1.xpose.msra.mxu0 0.0
    %123 = vmatprep.subr.mxu0 0.0
    %124 = vmatpush1.xpose.msra.mxu0 0.0
    %125 = vmatprep.subr.mxu0 0.0
    %126 = vmatpush1.xpose.msra.mxu0 0.0
    %127 = vmatprep.subr.mxu0 0.0
    %128 = vmatpush1.xpose.msra.mxu0 0.0
    %129 = vmatprep.subr.mxu0 0.0
    %130 = vmatpush1.xpose.msra.mxu0 0.0
    %131 = vmatprep.subr.mxu0 0.0
    %132 = vmatpush1.xpose.msra.mxu0 0.0
    %133 = vmatprep.subr.mxu0 0.0
    %134 = vmatpush1.xpose.msra.mxu0 0.0
    %135 = vmatprep.subr.mxu0 0.0
    %136 = vmatpush1.xpose.msra.mxu0 0.0
    %137 = vmatprep.subr.mxu0 0.0
    %138 = vmatpush1.xpose.msra.mxu0 0.0
    %139 = vmatprep.subr.mxu0 0.0
    %140 = vmatpush1.xpose.msra.mxu0 0.0
    %141 = vmatprep.subr.mxu0 0.0
    %142 = vmatpush1.xpose.msra.mxu0 0.0
    %143 = vmatprep.mubr.f32.mxu0 0.0
    %144 = vmatmul.mubr.f32.gmra.mrb[0].mxu0 %v74
    %v145 = vpop.f32.mrb[0].mxu0
    %v146 = vadd.f32 0.0, %v145
    %v147 = vpop.f32.mrb[0].mxu0
    %148 = vdwg.mxu0
    %v149 = vld [vmem:[#allocation3] sm:$0xff]
    %vm150 = vcmask 64512
    %v151 = vsel %vm150, %v146, -inf
    %152 = vmax.xlane.f32.xlu0 %v151
    %v153 = vpop.xlane.xlu0 %152
    %v154 = vmax.f32 %v149, %v153
    %v155 = vld [vmem:[#allocation4] sm:$0xff]
    %v156 = vsub.f32 %v149, %v154
    %v157 = vmul.f32 %v156, 1.442695
    %v158 = vpow.pop %v157
    %v159 = vmul.f32 %v155, %v158
    %161 = vset.pattern.permute.xlu0 0
    %162 = vperm.xlu0 %161, %v154
    %v163 = vpop.permute.xlu0 %162
    %v165 = vsub.f32 %v146, %v163
    %v166 = vmul.f32 %v165, 1.442695
    %v167 = vpow.pop %v166
    %v168 = vsel %vm150, %v167, 0.0
    %169 = vadd.xlane.f32.xlu0 %v168
    %v170 = vpop.xlane.xlu0 %169
    %v171 = vadd.f32 %v159, %v170
    %vm172 = vcmask 7168
    %173 = vst.msk [vmem:[#allocation4] sm:$0xff] %vm172, %v171
    %174 = vst.msk [vmem:[#allocation3] sm:$0xff] %vm172, %v154
    %v175 = vld [vmem:[#allocation5] sm:$0x1]
    %v176 = vrot.slane %v151, 4
    %v177 = vmax.f32 %v151, %v176
    %v178 = vrot.slane %v177, 2
    %v179 = vmax.f32 %v177, %v178
    %v180 = vrot.slane %v179, 1
    %v181 = vmax.f32 %v179, %v180
    %v182 = vmax.f32 %v175, %v181
    %v183 = vld [vmem:[#allocation6] sm:$0x1]
    %v184 = vsub.f32 %v175, %v182
    %v185 = vmul.f32 %v184, 1.442695
    %v186 = vpow.pop %v185
    %v187 = vmul.f32 %v183, %v186
    %v189 = vlaneseq
    %v190 = vshrl.u32 %v189, 7
    %v191 = vsub.s32 0, %v190
    %v192 = vrot.slane %v182, %v191
    %v194 = vsub.f32 %v146, %v192
    %v195 = vmul.f32 %v194, 1.442695
    %v196 = vpow.pop %v195
    %v197 = vsel %vm150, %v196, 0.0
    %v198 = vrot.slane %v197, 4
    %v199 = vadd.f32 %v197, %v198
    %v200 = vrot.slane %v199, 2
    %v201 = vadd.f32 %v199, %v200
    %v202 = vrot.slane %v201, 1
    %v203 = vadd.f32 %v201, %v202
    %v204 = vadd.f32 %v187, %v203
    %vm205 = vcmask 57344
    %206 = vst.msk [vmem:[#allocation6] sm:$0x1] %vm205, %v204
    %207 = vst.msk [vmem:[#allocation5] sm:$0x1] %vm205, %v182
    %p208 = scmp.eq.s32.totalorder 0, 0
    // Predicated region
    $region34: #{tpu_custom_call.1} parent=1 // pred_check
      %p209 = pneg %p208
    $region35: #{tpu_custom_call.1} parent=1 // pred_check_branch
      %211 = sbr.rel (%p209) target = $region37
    $region36: #{tpu_custom_call.1} parent=1 // pred_region
      %v212 = vlaneseq
      %v213 = vshrl.u32 %v212, 7
      %v214 = vlaneseq
      %v215 = vand.u32 %v214, 127
      %vm216 = vcmp.eq.s32.totalorder %v213, %v215
      %v217 = vsel %vm216, %v146, 0.0
      %v218 = vld [vmem:[#allocation9] sm:$0x1]
      %v219 = vsel %vm150, %v217, 0.0
      %220 = vadd.xlane.f32.xlu0 %v219
      %v221 = vpop.xlane.xlu0 %220
      %v222 = vrot.slane %v221, 4
      %v223 = vadd.f32 %v221, %v222
      %v224 = vrot.slane %v223, 2
      %v225 = vadd.f32 %v223, %v224
      %v226 = vrot.slane %v225, 1
      %v227 = vadd.f32 %v225, %v226
      %v228 = vadd.f32 %v218, %v227
      %vm229 = vcmask 0
      %230 = vst.msk [vmem:[#allocation9] sm:$0x1] %vm229, %v228
    $region37: #{tpu_custom_call.1} parent=1 // pred_fallthru
      _
    // Predicated region
    $region38: #{tpu_custom_call.1} parent=1 // pred_check
      %p231 = pneg %p41
    $region39: #{tpu_custom_call.1} parent=1 // pred_check_branch
      %233 = sbr.rel (%p231) target = $region41
    $region40: #{tpu_custom_call.1} parent=1 // pred_region
      %v234 = vld [vmem:[#allocation3] sm:$0xff]
      %v235 = vld [vmem:[#allocation4] sm:$0xff]
      %v236 = vlog2.pop %v235
      %v237 = vmul.f32 %v236, 0.6931472
      %v238 = vadd.f32 %v234, %v237
      %v239 = vld [vmem:[#allocation7] sm:$0x1]
      %v240 = vsel %vm172, %v238, 0.0
      %v241 = vrot.slane %v240, 4
      %v242 = vadd.f32 %v240, %v241
      %v243 = vrot.slane %v242, 2
      %v244 = vadd.f32 %v242, %v243
      %v245 = vrot.slane %v244, 1
      %v246 = vadd.f32 %v244, %v245
      %v247 = vadd.f32 %v239, %v246
      %vm248 = vcmask 0
      %249 = vst.msk [vmem:[#allocation7] sm:$0x1] %vm248, %v247
    $region41: #{tpu_custom_call.1} parent=1 // pred_fallthru
      _
    // Predicated region
    $region42: #{tpu_custom_call.1} parent=1 // pred_check
      %p250 = pneg %p40
    $region43: #{tpu_custom_call.1} parent=1 // pred_check_branch
      %252 = sbr.rel (%p250) target = $region45
    $region44: #{tpu_custom_call.1} parent=1 // pred_region
      %v253 = vld [vmem:[#allocation5] sm:$0x1]
      %v254 = vld [vmem:[#allocation6] sm:$0x1]
      %v255 = vlog2.pop %v254
      %v256 = vmul.f32 %v255, 0.6931472
      %v257 = vadd.f32 %v253, %v256
      %v258 = vld [vmem:[#allocation8] sm:$0x1]
      %v259 = vsel %vm205, %v257, 0.0
      %260 = vadd.xlane.f32.xlu0 %v259
      %v261 = vpop.xlane.xlu0 %260
      %v262 = vadd.f32 %v258, %v261
      %vm263 = vcmask 0
      %264 = vst.msk [vmem:[#allocation8] sm:$0x1] %vm263, %v262
    $region45: #{tpu_custom_call.1} parent=1 // pred_fallthru
      _
    // Predicated region
    $region46: #{tpu_custom_call.1} parent=1 // pred_check
      _
    $region47: #{tpu_custom_call.1} parent=1 // pred_check_branch
      %266 = sbr.rel (%p42) target = $region49
    $region48: #{tpu_custom_call.1} parent=1 // pred_region
      %v267 = vld [vmem:[#allocation7] sm:$0x1]
      %v268 = vld [vmem:[#allocation8] sm:$0x1]
      %v269 = vadd.f32 %v267, %v268
      %v270 = vld [vmem:[#allocation9] sm:$0x1]
      %v271 = vmul.f32 %v270, 2.0
      %v272 = vsub.f32 %v269, %v271
      %v273 = vmul.f32 %v272, 0.0625
      %vm274 = vcmask 0
      %275 = vst.msk [vmem:[#allocation16] sm:$0x1] %vm274, %v273
    $region49: #{tpu_custom_call.1} parent=1 // pred_fallthru
      _
    // Predicated region
    $region50: #{tpu_custom_call.1} parent=1 // pred_check
      _
    $region51: #{tpu_custom_call.1} parent=1 // pred_check_branch
      %277 = sbr.rel (0) target = $region53
    $region52: #{tpu_custom_call.1} parent=1 // pred_region
      %s279 = ssub.s32 16, 16
      %280 = vsyncadd [#allocation13], %s279
      %s282 = sshll.u32 [#allocation16], 4
      %s283 = int_to_ptr.vmem [resolvable:$true] %s282
      %285 = dma.vmem_to_hbm [thread:$0]  %s283, 16, %s3, [#allocation13]
    $region53: #{tpu_custom_call.1} parent=1 // pred_fallthru
      _
    // Predicated region
    $region54: #{tpu_custom_call.1} parent=1 // pred_check
      _
    $region55: #{tpu_custom_call.1} parent=1 // pred_check_branch
      %287 = sbr.rel (0) target = $region57
    $region56: #{tpu_custom_call.1} parent=1 // pred_region
      %288 = dma.done [#allocation13], 16
    $region57: #{tpu_custom_call.1} parent=1 // pred_fallthru
      _
    %289 = vsyncpa [#allocation12], 1
    %290 = vsyncpa [#allocation15], 1
    %291 = vsyncpa [#allocation13], 1

</llo_original>
